<compile_context>
chip_gen: v7x
topology: tpu7x:2x2x1
jax: 0.10.0
libtpu: 0.0.40
codegen_flags: <defaults>
</compile_context>

<pallas_src>
import jax
import jax.numpy as jnp
from jax.experimental import pallas as pl
from jax.experimental.pallas import tpu as pltpu


def _residual_linear_kernel(x_ref, w_ref, b_ref, o_ref):
    # x_ref: (TR, D) tile of input rows (input dtype, e.g. f32 or bf16)
    # w_ref: (D, D) full weight, stored in the MXU dtype (bf16)
    # b_ref: (1, D) bias, f32
    x = x_ref[...]
    # bf16 operands -> MXU at native rate, f32 accumulation.
    y = jnp.dot(x.astype(w_ref.dtype), w_ref[...],
                preferred_element_type=jnp.float32)
    # Residual + bias in f32, single downcast at the end.
    o_ref[...] = (x.astype(jnp.float32) + y + b_ref[...]).astype(o_ref.dtype)


def _round_up(n, m):
    return ((n + m - 1) // m) * m


def _vmem_capacity_bytes():
    try:
        return int(pltpu.get_tpu_info().vmem_capacity_bytes)
    except Exception:
        return 64 << 20  # safe lower bound across generations


def residual_linear(x, w, b, *, row_tile=None, mxu_dtype=jnp.bfloat16):
    """x: (B, L, D).  w: (D, D) such that module(x) = x @ w + b.  b: (D,)."""
    B, L, D = x.shape
    rows = B * L

    x_item = jnp.dtype(x.dtype).itemsize
    w_item = jnp.dtype(mxu_dtype).itemsize

    vmem_cap = _vmem_capacity_bytes()
    vmem_budget = int(vmem_cap * 0.85)

    # Row tile: 1024 on 128 MiB parts (v5e/v6e), 512 on v7x (64 MiB).
    if row_tile is None:
        row_tile = 1024 if vmem_cap >= (96 << 20) else 512

    def _vmem_needed(tr_):
        # Worst case (fallback path double-buffers the resident weight too).
        return (2 * tr_ * D * x_item          # x tile, double buffered
                + 2 * tr_ * D * x_item        # out tile, double buffered
                + 2 * D * D * w_item          # weight
                + 2 * D * 4)                  # bias

    # Never tile larger than the (sublane-rounded) row count.
    tr = min(row_tile, _round_up(rows, 8))
    # Shrink the tile if the VMEM budget would be exceeded (very large D).
    while _vmem_needed(tr) + (2 << 20) > vmem_budget and tr > 8:
        tr = max(8, _round_up(tr // 2, 8))
    # v7x has 2 TensorCores: make sure the "parallel" grid has >= 2 steps
    # whenever the row count allows it.
    if rows > 8 and pl.cdiv(rows, tr) < 2:
        tr = max(8, _round_up((rows + 1) // 2, 8))

    grid = pl.cdiv(rows, tr)

    # Reshape only (no pad / slice round-trips): the partial last tile is
    # handled by Pallas (masked stores), so HBM traffic is exactly `rows`.
    x2 = x.reshape(rows, D)
    w_mxu = w.astype(mxu_dtype)
    b2 = b.reshape(1, D).astype(jnp.float32)

    vmem_bytes = int(min(max(_vmem_needed(tr) + (4 << 20), 16 << 20),
                         vmem_budget))

    cost = pl.CostEstimate(
        flops=2 * rows * D * D,
        transcendentals=0,
        bytes_accessed=2 * rows * D * x_item + D * D * w_item + D * 4,
    )

    out_shape = jax.ShapeDtypeStruct((rows, D), x.dtype)

    def _make_in_specs(single_buffer_consts):
        const_kwargs = (
            dict(pipeline_mode=pl.Buffered(1)) if single_buffer_consts else {}
        )
        return [
            pl.BlockSpec((tr, D), lambda i: (i, 0)),                   # x tile
            pl.BlockSpec((D, D), lambda i: (0, 0), **const_kwargs),    # weight
            pl.BlockSpec((1, D), lambda i: (0, 0), **const_kwargs),    # bias
        ]

    def _run(in_specs):
        return pl.pallas_call(
            _residual_linear_kernel,
            out_shape=out_shape,
            grid_spec=pltpu.PrefetchScalarGridSpec(
                num_scalar_prefetch=0,
                grid=(grid,),
                in_specs=in_specs,
                out_specs=pl.BlockSpec((tr, D), lambda i: (i, 0)),
            ),
            compiler_params=pltpu.CompilerParams(
                dimension_semantics=("parallel",),
                vmem_limit_bytes=vmem_bytes,
            ),
            cost_estimate=cost,
        )(x2, w_mxu, b2)

    try:
        # Constant-index weight/bias: a second buffer is pure VMEM waste.
        out2 = _run(_make_in_specs(True))
    except Exception:
        # Fallback for Pallas versions without pipeline_mode support.
        out2 = _run(_make_in_specs(False))

    return out2.reshape(B, L, D)


def _reference(x, w, b):
    return x + (jnp.einsum("bld,de->ble", x, w) + b)


if __name__ == "__main__":
    # Small demo shapes; D=128 keeps lanes dense (real Enformer D >= 768).
    B, L, D = 2, 8, 128
    key = jax.random.PRNGKey(0)
    kx, kw, kb = jax.random.split(key, 3)

    x = jax.random.normal(kx, (B, L, D), dtype=jnp.float32)
    # Synthetic inner Linear(dim, dim) parameters.
    # (nn.Linear weight is (D_out, D_in); we store its transpose so y = x @ w.)
    w = jax.random.normal(kw, (D, D), dtype=jnp.float32) * (1.0 / jnp.sqrt(D))
    b = jax.random.normal(kb, (D,), dtype=jnp.float32) * 0.1

    out = residual_linear(x, w, b)
    out = jax.block_until_ready(out)

    ref = _reference(x, w, b)
    assert out.shape == (B, L, D)
    # bf16 MXU operands with f32 accumulation -> bf16-level tolerance.
    assert jnp.allclose(out, ref, atol=3e-2, rtol=3e-2), "mismatch vs reference"
    print("KERNEL_OK")
</pallas_src>

<mosaic_0001>
module attributes {stable_mosaic.version = 11 : i64} {
  func.func @_residual_linear_kernel(%arg0: i32, %arg1: memref<8x128xf32, #tpu.memory_space<vmem>>, %arg2: memref<128x128xbf16, #tpu.memory_space<vmem>>, %arg3: memref<1x128xf32, #tpu.memory_space<vmem>>, %arg4: memref<8x128xf32, #tpu.memory_space<vmem>>) attributes {dimension_semantics = [#tpu.dimension_semantics<parallel>], iteration_bounds = array<i64: 2>, scalar_prefetch = 0 : i64, scratch_operands = 0 : i64, tpu.core_type = #tpu.core_type<tc>, window_params = [{transform_indices = @transform_0, window_bounds = array<i64: 8, 128>}, {pipeline_mode = #tpu.pipeline_mode<synchronous>, transform_indices = @transform_1, window_bounds = array<i64: 128, 128>}, {pipeline_mode = #tpu.pipeline_mode<synchronous>, transform_indices = @transform_2, window_bounds = array<i64: 1, 128>}, {transform_indices = @transform_3, window_bounds = array<i64: 8, 128>}]} {
    %c0 = arith.constant 0 : index
    %c0_0 = arith.constant 0 : index
    %0 = vector.load %arg1[%c0, %c0_0] : memref<8x128xf32, #tpu.memory_space<vmem>>, vector<8x128xf32>
    %1 = arith.truncf %0 : vector<8x128xf32> to vector<8x128xbf16>
    %c0_1 = arith.constant 0 : index
    %c0_2 = arith.constant 0 : index
    %2 = vector.load %arg2[%c0_1, %c0_2] : memref<128x128xbf16, #tpu.memory_space<vmem>>, vector<128x128xbf16>
    %cst = arith.constant dense<0.000000e+00> : vector<8x128xf32>
    %3 = tpu.matmul %1, %2, %cst {dimension_numbers = #tpu.dot_dimension_numbers<[1], [0], [0], [1], [0, 0, 1, 1], [], []>} : vector<8x128xbf16>, vector<128x128xbf16>, vector<8x128xf32> -> vector<8x128xf32>
    %4 = arith.addf %0, %3 : vector<8x128xf32>
    %c0_3 = arith.constant 0 : index
    %c0_4 = arith.constant 0 : index
    %5 = vector.load %arg3[%c0_3, %c0_4] : memref<1x128xf32, #tpu.memory_space<vmem>>, vector<1x128xf32>
    %6 = vector.broadcast %5 : vector<1x128xf32> to vector<8x128xf32>
    %7 = arith.addf %4, %6 : vector<8x128xf32>
    %c0_5 = arith.constant 0 : index
    %c0_6 = arith.constant 0 : index
    %8 = vector.load %arg4[%c0_5, %c0_6] : memref<8x128xf32, #tpu.memory_space<vmem>>, vector<8x128xf32>
    tpu.vector_store %arg4[%c0_5, %c0_6], %7 {strides = array<i32>} : memref<8x128xf32, #tpu.memory_space<vmem>>, vector<8x128xf32>,
    return
  }
  func.func @transform_0(%arg0: i32) -> (i32, i32) {
    %c0_i32 = arith.constant 0 : i32
    %c0_i32_0 = arith.constant 0 : i32
    return %arg0, %c0_i32 : i32, i32
  }
  func.func @transform_1(%arg0: i32) -> (i32, i32) {
    %c0_i32 = arith.constant 0 : i32
    %c0_i32_0 = arith.constant 0 : i32
    %c0_i32_1 = arith.constant 0 : i32
    return %c0_i32, %c0_i32_0 : i32, i32
  }
  func.func @transform_2(%arg0: i32) -> (i32, i32) {
    %c0_i32 = arith.constant 0 : i32
    %c0_i32_0 = arith.constant 0 : i32
    %c0_i32_1 = arith.constant 0 : i32
    return %c0_i32, %c0_i32_0 : i32, i32
  }
  func.func @transform_3(%arg0: i32) -> (i32, i32) {
    %c0_i32 = arith.constant 0 : i32
    %c0_i32_0 = arith.constant 0 : i32
    return %arg0, %c0_i32 : i32, i32
  }
}

module attributes {stable_mosaic.version = 11 : i64} {
  func.func @_residual_linear_kernel(%arg0: i32, %arg1: memref<8x128xf32, #tpu.memory_space<vmem>>, %arg2: memref<128x128xbf16, #tpu.memory_space<vmem>>, %arg3: memref<1x128xf32, #tpu.memory_space<vmem>>, %arg4: memref<8x128xf32, #tpu.memory_space<vmem>>) attributes {dimension_semantics = [#tpu.dimension_semantics<parallel>], iteration_bounds = array<i64: 2>, scalar_prefetch = 0 : i64, scratch_operands = 0 : i64, tpu.core_type = #tpu.core_type<tc>, window_params = [{transform_indices = @transform_0, window_bounds = array<i64: 8, 128>}, {pipeline_mode = #tpu.pipeline_mode<synchronous>, transform_indices = @transform_1, window_bounds = array<i64: 128, 128>}, {pipeline_mode = #tpu.pipeline_mode<synchronous>, transform_indices = @transform_2, window_bounds = array<i64: 1, 128>}, {transform_indices = @transform_3, window_bounds = array<i64: 8, 128>}]} {
    %c0 = arith.constant 0 : index
    %c0_0 = arith.constant 0 : index
    %0 = vector.load %arg1[%c0, %c0_0] : memref<8x128xf32, #tpu.memory_space<vmem>>, vector<8x128xf32>
    %1 = arith.truncf %0 : vector<8x128xf32> to vector<8x128xbf16>
    %c0_1 = arith.constant 0 : index
    %c0_2 = arith.constant 0 : index
    %2 = vector.load %arg2[%c0_1, %c0_2] : memref<128x128xbf16, #tpu.memory_space<vmem>>, vector<128x128xbf16>
    %cst = arith.constant dense<0.000000e+00> : vector<8x128xf32>
    %3 = tpu.matmul %1, %2, %cst {dimension_numbers = #tpu.dot_dimension_numbers<[1], [0], [0], [1], [0, 0, 1, 1], [], []>} : vector<8x128xbf16>, vector<128x128xbf16>, vector<8x128xf32> -> vector<8x128xf32>
    %4 = arith.addf %0, %3 : vector<8x128xf32>
    %c0_3 = arith.constant 0 : index
    %c0_4 = arith.constant 0 : index
    %5 = vector.load %arg3[%c0_3, %c0_4] : memref<1x128xf32, #tpu.memory_space<vmem>>, vector<1x128xf32>
    %6 = vector.broadcast %5 : vector<1x128xf32> to vector<8x128xf32>
    %7 = arith.addf %4, %6 : vector<8x128xf32>
    %c0_5 = arith.constant 0 : index
    %c0_6 = arith.constant 0 : index
    %8 = vector.load %arg4[%c0_5, %c0_6] : memref<8x128xf32, #tpu.memory_space<vmem>>, vector<8x128xf32>
    tpu.vector_store %arg4[%c0_5, %c0_6], %7 {strides = array<i32>} : memref<8x128xf32, #tpu.memory_space<vmem>>, vector<8x128xf32>,
    return
  }
  func.func @transform_0(%arg0: i32) -> (i32, i32) {
    %c0_i32 = arith.constant 0 : i32
    %c0_i32_0 = arith.constant 0 : i32
    return %arg0, %c0_i32 : i32, i32
  }
  func.func @transform_1(%arg0: i32) -> (i32, i32) {
    %c0_i32 = arith.constant 0 : i32
    %c0_i32_0 = arith.constant 0 : i32
    %c0_i32_1 = arith.constant 0 : i32
    return %c0_i32, %c0_i32_0 : i32, i32
  }
  func.func @transform_2(%arg0: i32) -> (i32, i32) {
    %c0_i32 = arith.constant 0 : i32
    %c0_i32_0 = arith.constant 0 : i32
    %c0_i32_1 = arith.constant 0 : i32
    return %c0_i32, %c0_i32_0 : i32, i32
  }
  func.func @transform_3(%arg0: i32) -> (i32, i32) {
    %c0_i32 = arith.constant 0 : i32
    %c0_i32_0 = arith.constant 0 : i32
    return %arg0, %c0_i32 : i32, i32
  }
}

</mosaic_0001>

<llo_original>
// kernel: tpu_custom_call.1
$region0: #{tpu_custom_call.1}
  #allocation0 [shape = 'u32[]', space=smem, size = 0x4, offset = 0x4, fixed_abs, tag = 'smem constant byte address 0x4 - core index']
  #allocation1 [shape = 'u32[144,128]{1,0:T(1,128)}', space=vmem, size = 0x12000, scoped, tag = 'internal scratch']
  %s0 = inlined_call_operand.hbm [shape: f32[16,128], index: 0, kind: input, shape index: {}]
  %s1 = inlined_call_operand.hbm [shape: bf16[128,128], index: 1, kind: input, shape index: {}]
  %s2 = inlined_call_operand.vmem [shape: f32[1,128], index: 2, kind: input, shape index: {}]
  %s3 = inlined_call_operand.hbm [shape: f32[16,128], index: 3, kind: output, shape index: {}]
  %s4 = sld [smem:[#allocation0]]
  $region53: #{tpu_custom_call.1} parent=0
    _
  %s6 = ssub.s32 1, %s4
  %s7 = scalar_select 0, %s6, %s4
  $region1: #{tpu_custom_call.1} parent=0
    #allocation2 [shape = 'u8[8192]{0}', space=vmem, size = 0x2000, scoped, tag = 'input window, operand 0']
    #allocation3 [shape = 's32[2]{0}', space=sflag, size = 0x8, scoped, tag = 'scoped memory for tpu_custom_call.1']
    #allocation4 [shape = 's32[2]{0}', space=sflag, size = 0x8, scoped, tag = 'scoped memory for tpu_custom_call.1']
    #allocation5 [shape = 'u8[32768]{0}', space=vmem, size = 0x8000, scoped, tag = 'input window, operand 1, single buffered']
    #allocation6 [shape = 's32[1]{0}', space=sflag, size = 0x4, scoped, tag = 'scoped memory for tpu_custom_call.1']
    #allocation7 [shape = 'u8[8192]{0}', space=vmem, size = 0x2000, scoped, tag = 'output window, operand 0']
    %8 = vsyncpa [#allocation3], 0
    %s9 = scalar_lea.sflag [#allocation3], 1
    %10 = vsyncpa %s9, 0
    %11 = vsyncpa [#allocation6], 0
    %12 = vsyncpa [#allocation4], 0
    %s13 = scalar_lea.sflag [#allocation4], 1
    %14 = vsyncpa %s13, 0
    loop: start=0, step=1, limit=4
    $region2: #{tpu_custom_call.1} parent=1 // loop_pre_header
      _
    $region3: #{tpu_custom_call.1} parent=1 // loop_header
      %s16 = sphi 0, %s20
      %p17 = scmp.ge.s32.totalorder %s16, 4
      %s26 = sphi 0, %s28
      %s29 = sphi 0, %s26
      %s30 = sphi 0, %s29
      %s46 = sphi 0, %s30
      %s50 = sphi 0, %s50
      %s52 = sphi 0, %s50
      %s53 = sphi 0, %s52
      %s67 = sphi 0, %s53
      %s71 = sphi 0, %s71
      %s73 = sphi 0, %s71
      %s74 = sphi 0, %s73
      %s88 = sphi 0, %s74
      %s94 = sphi 0, %s96
      %s97 = sphi 0, %s94
      %s98 = sphi 0, %s97
      %s114 = sphi 0, %s98
    $region4: #{tpu_custom_call.1} parent=1 // loop_header_branch
      %19 = sbr.rel (%p17) target = $region8
    $region5: #{tpu_custom_call.1} parent=1 // loop_body
      %s21 = ssub.s32 %s16, 1
      %s22 = ssub.s32 %s16, 2
      %s23 = sadd.s32 %s16, 1
      %s24 = ssub.s32 %s16, %s23
      %p25 = scmp.eq.s32.totalorder %s24, 0
      %s27 = sadd.s32 %s26, 1
      %s28 = scalar_select %p25, %s26, %s27
      %p31 = pneg %p25
      %p32 = scmp.eq.s32.totalorder %s16, 1
      %p33 = por %p31, %p32
      %p34 = scmp.ne.s32.totalorder %s26, %s29
      %p35 = scmp.eq.s32.totalorder %s16, 0
      %p36 = por %p34, %p35
      %p37 = scmp.ne.s32.totalorder %s26, %s29
      %p38 = scmp.eq.s32.totalorder %s21, 1
      %p39 = por %p37, %p38
      %p40 = scmp.ne.s32.totalorder %s29, %s30
      %p41 = scmp.eq.s32.totalorder %s21, 0
      %p42 = por %p40, %p41
      %p43 = scmp.ne.s32.totalorder %s29, %s30
      %p44 = scmp.eq.s32.totalorder %s22, 1
      %p45 = por %p43, %p44
      %p47 = scmp.ne.s32.totalorder %s30, %s46
      %p48 = scmp.eq.s32.totalorder %s22, 0
      %p49 = por %p47, %p48
      %s51 = sadd.s32 %s50, 1
      %p54 = scmp.eq.s32.totalorder %s16, 1
      %p55 = scmp.ne.s32.totalorder %s50, %s52
      %p56 = scmp.eq.s32.totalorder %s16, 0
      %p57 = por %p55, %p56
      %p58 = scmp.ne.s32.totalorder %s50, %s52
      %p59 = scmp.eq.s32.totalorder %s21, 1
      %p60 = por %p58, %p59
      %p61 = scmp.ne.s32.totalorder %s52, %s53
      %p62 = scmp.eq.s32.totalorder %s21, 0
      %p63 = por %p61, %p62
      %p64 = scmp.ne.s32.totalorder %s52, %s53
      %p65 = scmp.eq.s32.totalorder %s22, 1
      %p66 = por %p64, %p65
      %p68 = scmp.ne.s32.totalorder %s53, %s67
      %p69 = scmp.eq.s32.totalorder %s22, 0
      %p70 = por %p68, %p69
      %s72 = sadd.s32 %s71, 1
      %p75 = scmp.eq.s32.totalorder %s16, 1
      %p76 = scmp.ne.s32.totalorder %s71, %s73
      %p77 = scmp.eq.s32.totalorder %s16, 0
      %p78 = por %p76, %p77
      %p79 = scmp.ne.s32.totalorder %s71, %s73
      %p80 = scmp.eq.s32.totalorder %s21, 1
      %p81 = por %p79, %p80
      %p82 = scmp.ne.s32.totalorder %s73, %s74
      %p83 = scmp.eq.s32.totalorder %s21, 0
      %p84 = por %p82, %p83
      %p85 = scmp.ne.s32.totalorder %s73, %s74
      %p86 = scmp.eq.s32.totalorder %s22, 1
      %p87 = por %p85, %p86
      %p89 = scmp.ne.s32.totalorder %s74, %s88
      %p90 = scmp.eq.s32.totalorder %s22, 0
      %p91 = por %p89, %p90
      %s92 = ssub.s32 %s16, %s23
      %p93 = scmp.eq.s32.totalorder %s92, 0
      %s95 = sadd.s32 %s94, 1
      %s96 = scalar_select %p93, %s94, %s95
      %p99 = pneg %p93
      %p100 = scmp.eq.s32.totalorder %s16, 1
      %p101 = por %p99, %p100
      %p102 = scmp.ne.s32.totalorder %s94, %s97
      %p103 = scmp.eq.s32.totalorder %s16, 0
      %p104 = por %p102, %p103
      %p105 = scmp.ne.s32.totalorder %s94, %s97
      %p106 = scmp.eq.s32.totalorder %s21, 1
      %p107 = por %p105, %p106
      %p108 = scmp.ne.s32.totalorder %s97, %s98
      %p109 = scmp.eq.s32.totalorder %s21, 0
      %p110 = por %p108, %p109
      %p111 = scmp.ne.s32.totalorder %s97, %s98
      %p112 = scmp.eq.s32.totalorder %s22, 1
      %p113 = por %p111, %p112
      %p115 = scmp.ne.s32.totalorder %s98, %s114
      %p116 = scmp.eq.s32.totalorder %s22, 0
      %p117 = por %p115, %p116
      %p118 = scmp.le.s32.totalorder 1, %s16
      %p119 = scmp.lt.s32.totalorder %s16, 3
      %p120 = pnand %p118, %p119
      %p121 = pneg %p120
      // Predicated region
      $region9: #{tpu_custom_call.1} parent=5 // pred_check
        _
      $region10: #{tpu_custom_call.1} parent=5 // pred_check_branch
        %123 = sbr.rel (%p120) target = $region12
      $region11: #{tpu_custom_call.1} parent=5 // pred_region
        %s124 = ssub.s32 %s16, 1
        // Predicated region
        $region13: #{tpu_custom_call.1} parent=11 // pred_check
          %p125 = pneg %p63
        $region14: #{tpu_custom_call.1} parent=11 // pred_check_branch
          %127 = sbr.rel (%p125) target = $region16
        $region15: #{tpu_custom_call.1} parent=11 // pred_region
          %s129 = ssub.s32 1024, 1024
          %130 = vsyncadd [#allocation6], %s129
          %s131 = sshll.u32 [#allocation5], 4
          %s132 = int_to_ptr.vmem [resolvable:$true] %s131
          %137 = dma.hbm_to_vmem [thread:$0]  %s1, 1024, %s132, [#allocation6], 64, 64, 4
        $region16: #{tpu_custom_call.1} parent=11 // pred_fallthru
          _
        // Predicated region
        $region17: #{tpu_custom_call.1} parent=11 // pred_check
          %p138 = pneg %p84
        $region18: #{tpu_custom_call.1} parent=11 // pred_check_branch
          %140 = sbr.rel (%p138) target = $region20
        $region19: #{tpu_custom_call.1} parent=11 // pred_region
          _
        $region20: #{tpu_custom_call.1} parent=11 // pred_fallthru
          _
      $region12: #{tpu_custom_call.1} parent=5 // pred_fallthru
        _
      %p141 = scmp.lt.s32.totalorder %s16, 2
      // Predicated region
      $region21: #{tpu_custom_call.1} parent=5 // pred_check
        %p142 = pneg %p141
      $region22: #{tpu_custom_call.1} parent=5 // pred_check_branch
        %144 = sbr.rel (%p142) target = $region24
      $region23: #{tpu_custom_call.1} parent=5 // pred_region
        // Predicated region
        $region25: #{tpu_custom_call.1} parent=23 // pred_check
          %p145 = pneg %p36
        $region26: #{tpu_custom_call.1} parent=23 // pred_check_branch
          %147 = sbr.rel (%p145) target = $region28
        $region27: #{tpu_custom_call.1} parent=23 // pred_region
          %s148 = sand.u32 %s26, 1
          %s149 = scalar_lea.sflag [#allocation3], %s148
          %s150 = sand.u32 %s26, 1
          %s151 = smul.addr %s150, 8
          %s152 = scalar_lea.vmem [#allocation2], %s151
          %s154 = ssub.s32 128, 128
          %155 = vsyncadd %s149, %s154
          %s156 = smul.addr %s16, 128
          %s157 = scalar_lea.hbm %s0, %s156
          %s159 = sshll.u32 %s152, 4
          %s160 = int_to_ptr.vmem [resolvable:$true] %s159
          %162 = dma.hbm_to_vmem [thread:$0]  %s157, 128, %s160, %s149
        $region28: #{tpu_custom_call.1} parent=23 // pred_fallthru
          _
      $region24: #{tpu_custom_call.1} parent=5 // pred_fallthru
        _
      %p163 = scmp.le.s32.totalorder 1, %s16
      %p164 = scmp.lt.s32.totalorder %s16, 3
      %p165 = pnand %p163, %p164
      %p166 = pneg %p165
      // Predicated region
      $region29: #{tpu_custom_call.1} parent=5 // pred_check
        _
      $region30: #{tpu_custom_call.1} parent=5 // pred_check_branch
        %168 = sbr.rel (%p165) target = $region32
      $region31: #{tpu_custom_call.1} parent=5 // pred_region
        %s169 = ssub.s32 %s16, 1
        %s170 = sand.u32 %s29, 1
        %s171 = scalar_lea.sflag [#allocation3], %s170
        %s172 = sand.u32 %s29, 1
        %s173 = smul.addr %s172, 8
        %s174 = scalar_lea.vmem [#allocation2], %s173
        // Predicated region
        $region33: #{tpu_custom_call.1} parent=31 // pred_check
          %p175 = pneg %p42
        $region34: #{tpu_custom_call.1} parent=31 // pred_check_branch
          %177 = sbr.rel (%p175) target = $region36
        $region35: #{tpu_custom_call.1} parent=31 // pred_region
          %178 = dma.done %s171, 128
        $region36: #{tpu_custom_call.1} parent=31 // pred_fallthru
          _
        // Predicated region
        $region37: #{tpu_custom_call.1} parent=31 // pred_check
          %p179 = pneg %p63
        $region38: #{tpu_custom_call.1} parent=31 // pred_check_branch
          %181 = sbr.rel (%p179) target = $region40
        $region39: #{tpu_custom_call.1} parent=31 // pred_region
          %182 = dma.done [#allocation6], 1024
        $region40: #{tpu_custom_call.1} parent=31 // pred_fallthru
          _
        %s183 = sand.u32 %s29, 1
        %s184 = scalar_lea.sflag [#allocation3], %s183
        %s185 = sand.u32 %s29, 1
        %s186 = smul.addr %s185, 8
        %s187 = scalar_lea.vmem [#allocation2], %s186
        %p188 = pneg %p42
        %p189 = pneg %p39
        %p190 = pneg %p63
        %p191 = pneg %p60
        %p192 = pneg %p84
        %p193 = pneg %p81
        %p194 = pneg %p110
        %p195 = pneg %p107
        %s196 = sand.u32 %s97, 1
        %s197 = scalar_lea.sflag [#allocation4], %s196
        %s198 = sand.u32 %s97, 1
        %s199 = smul.addr %s198, 8
        %s200 = scalar_lea.vmem [#allocation7], %s199
        %v202 = vld [vmem:[%s174] sm:$0xff]
        %v203 = vpack.c.bf16 %v202, %v202
        %v204 = vld [vmem:[#allocation5] sm:$0xf]
        %v205 = vld [vmem:[#allocation5 + $0x4] sm:$0xf]
        %v206 = vld [vmem:[#allocation5 + $0x8] sm:$0xf]
        %v207 = vld [vmem:[#allocation5 + $0xc] sm:$0xf]
        %v208 = vld [vmem:[#allocation5 + $0x10] sm:$0xf]
        %v209 = vld [vmem:[#allocation5 + $0x14] sm:$0xf]
        %v210 = vld [vmem:[#allocation5 + $0x18] sm:$0xf]
        %v211 = vld [vmem:[#allocation5 + $0x1c] sm:$0xf]
        %v212 = vld [vmem:[#allocation5 + $0x20] sm:$0xf]
        %v213 = vld [vmem:[#allocation5 + $0x24] sm:$0xf]
        %v214 = vld [vmem:[#allocation5 + $0x28] sm:$0xf]
        %v215 = vld [vmem:[#allocation5 + $0x2c] sm:$0xf]
        %v216 = vld [vmem:[#allocation5 + $0x30] sm:$0xf]
        %v217 = vld [vmem:[#allocation5 + $0x34] sm:$0xf]
        %v218 = vld [vmem:[#allocation5 + $0x38] sm:$0xf]
        %v219 = vld [vmem:[#allocation5 + $0x3c] sm:$0xf]
        %v236 = vunpack.c.l.b16 %v204
        %v237 = vunpack.c.l.b16 %v205
        %v238 = vunpack.c.l.b16 %v206
        %v239 = vunpack.c.l.b16 %v207
        %v240 = vunpack.c.l.b16 %v208
        %v241 = vunpack.c.l.b16 %v209
        %v242 = vunpack.c.l.b16 %v210
        %v243 = vunpack.c.l.b16 %v211
        %v244 = vunpack.c.l.b16 %v212
        %v245 = vunpack.c.l.b16 %v213
        %v246 = vunpack.c.l.b16 %v214
        %v247 = vunpack.c.l.b16 %v215
        %v248 = vunpack.c.l.b16 %v216
        %v249 = vunpack.c.l.b16 %v217
        %v250 = vunpack.c.l.b16 %v218
        %v251 = vunpack.c.l.b16 %v219
        %v252 = vpack.c.b16 %v237, %v236
        %v253 = vpack.c.b16 %v239, %v238
        %v254 = vpack.c.b16 %v241, %v240
        %v255 = vpack.c.b16 %v243, %v242
        %v256 = vpack.c.b16 %v245, %v244
        %v257 = vpack.c.b16 %v247, %v246
        %v258 = vpack.c.b16 %v249, %v248
        %v259 = vpack.c.b16 %v251, %v250
        %268 = vmatprep.subr.bf16.mxu0 0
        %269 = vmatpush1.bf16.msra.mxu0 %v252
        %270 = vmatprep.subr.bf16.mxu0 0
        %271 = vmatpush1.bf16.msra.mxu0 %v253
        %272 = vmatprep.subr.bf16.mxu0 0
        %273 = vmatpush1.bf16.msra.mxu0 %v254
        %274 = vmatprep.subr.bf16.mxu0 0
        %275 = vmatpush1.bf16.msra.mxu0 %v255
        %276 = vmatprep.subr.bf16.mxu0 0
        %277 = vmatpush1.bf16.msra.mxu0 %v256
        %278 = vmatprep.subr.bf16.mxu0 0
        %279 = vmatpush1.bf16.msra.mxu0 %v257
        %280 = vmatprep.subr.bf16.mxu0 0
        %281 = vmatpush1.bf16.msra.mxu0 %v258
        %282 = vmatprep.subr.bf16.mxu0 0
        %283 = vmatpush1.bf16.msra.mxu0 %v259
        %284 = vmatprep.subr.bf16.mxu0 0
        %285 = vmatpush1.bf16.msra.mxu0 0
        %286 = vmatprep.subr.bf16.mxu0 0
        %287 = vmatpush1.bf16.msra.mxu0 0
        %288 = vmatprep.subr.bf16.mxu0 0
        %289 = vmatpush1.bf16.msra.mxu0 0
        %290 = vmatprep.subr.bf16.mxu0 0
        %291 = vmatpush1.bf16.msra.mxu0 0
        %292 = vmatprep.subr.bf16.mxu0 0
        %293 = vmatpush1.bf16.msra.mxu0 0
        %294 = vmatprep.subr.bf16.mxu0 0
        %295 = vmatpush1.bf16.msra.mxu0 0
        %296 = vmatprep.subr.bf16.mxu0 0
        %297 = vmatpush1.bf16.msra.mxu0 0
        %298 = vmatprep.subr.bf16.mxu0 0
        %299 = vmatpush1.bf16.msra.mxu0 0
        %300 = vmatprep.mubr.bf16.mxu0 0
        %301 = vmatmul.mubr.bf16.gmra.mrb[0].mxu0 %v203
        %v302 = vpop.f32.mrb[0].mxu0
        %v303 = vadd.f32 0.0, %v302
        %v304 = vpop.f32.mrb[0].mxu0
        %v305 = vpop.f32.mrb[0].mxu0
        %v306 = vpop.f32.mrb[0].mxu0
        %307 = vdwg.mxu0
        %v308 = vadd.f32 %v202, %v303
        %v309 = vld [vmem:[%s2] sm:$0x1]
        %v311 = vlaneseq
        %v312 = vshrl.u32 %v311, 7
        %v313 = vsub.s32 0, %v312
        %v314 = vrot.slane %v309, %v313
        %v316 = vadd.f32 %v308, %v314
        %317 = vst [vmem:[%s200] sm:$0xff] %v316
        %s318 = sand.u32 %s97, 1
        %s319 = scalar_lea.sflag [#allocation4], %s318
        %s320 = sand.u32 %s97, 1
        %s321 = smul.addr %s320, 8
        %s322 = scalar_lea.vmem [#allocation7], %s321
        // Predicated region
        $region41: #{tpu_custom_call.1} parent=31 // pred_check
          %p323 = pneg %p107
        $region42: #{tpu_custom_call.1} parent=31 // pred_check_branch
          %325 = sbr.rel (%p323) target = $region44
        $region43: #{tpu_custom_call.1} parent=31 // pred_region
          %s327 = ssub.s32 128, 128
          %328 = vsyncadd %s319, %s327
          %s329 = smul.addr %s21, 128
          %s330 = scalar_lea.hbm %s3, %s329
          %s332 = sshll.u32 %s322, 4
          %s333 = int_to_ptr.vmem [resolvable:$true] %s332
          %335 = dma.vmem_to_hbm [thread:$0]  %s333, 128, %s330, %s319
        $region44: #{tpu_custom_call.1} parent=31 // pred_fallthru
          _
      $region32: #{tpu_custom_call.1} parent=5 // pred_fallthru
        _
      %p336 = scmp.le.s32.totalorder 2, %s16
      // Predicated region
      $region45: #{tpu_custom_call.1} parent=5 // pred_check
        %p337 = pneg %p336
      $region46: #{tpu_custom_call.1} parent=5 // pred_check_branch
        %339 = sbr.rel (%p337) target = $region48
      $region47: #{tpu_custom_call.1} parent=5 // pred_region
        %s340 = ssub.s32 %s16, 2
        // Predicated region
        $region49: #{tpu_custom_call.1} parent=47 // pred_check
          %p341 = pneg %p113
        $region50: #{tpu_custom_call.1} parent=47 // pred_check_branch
          %343 = sbr.rel (%p341) target = $region52
        $region51: #{tpu_custom_call.1} parent=47 // pred_region
          %s344 = sand.u32 %s98, 1
          %s345 = scalar_lea.sflag [#allocation4], %s344
          %s346 = sand.u32 %s98, 1
          %s347 = smul.addr %s346, 8
          %s348 = scalar_lea.vmem [#allocation7], %s347
          %349 = dma.done %s345, 128
        $region52: #{tpu_custom_call.1} parent=47 // pred_fallthru
          _
      $region48: #{tpu_custom_call.1} parent=5 // pred_fallthru
        _
    $region6: #{tpu_custom_call.1} parent=1 // loop_footer
      %s20 = sadd.s32 1, %s16
    $region7: #{tpu_custom_call.1} parent=1 // loop_footer_branch
      %15 = sbr.rel target = $region3
    $region8: #{tpu_custom_call.1} parent=1 // loop_exit
      _
    %350 = vsyncpa [#allocation3], 1
    %s351 = scalar_lea.sflag [#allocation3], 1
    %352 = vsyncpa %s351, 1
    %353 = vsyncpa [#allocation6], 1
    %354 = vsyncpa [#allocation4], 1
    %s355 = scalar_lea.sflag [#allocation4], 1
    %356 = vsyncpa %s355, 1

// kernel: tpu_custom_call.1
$region0: #{tpu_custom_call.1}
  #allocation0 [shape = 'u32[]', space=smem, size = 0x4, offset = 0x4, fixed_abs, tag = 'smem constant byte address 0x4 - core index']
  #allocation1 [shape = 'u32[144,128]{1,0:T(1,128)}', space=vmem, size = 0x12000, scoped, tag = 'internal scratch']
  %s0 = inlined_call_operand.hbm [shape: f32[16,128], index: 0, kind: input, shape index: {}]
  %s1 = inlined_call_operand.hbm [shape: bf16[128,128], index: 1, kind: input, shape index: {}]
  %s2 = inlined_call_operand.vmem [shape: f32[1,128], index: 2, kind: input, shape index: {}]
  %s3 = inlined_call_operand.hbm [shape: f32[16,128], index: 3, kind: output, shape index: {}]
  %s4 = sld [smem:[#allocation0]]
  $region53: #{tpu_custom_call.1} parent=0
    _
  %s6 = ssub.s32 1, %s4
  %s7 = scalar_select 0, %s6, %s4
  $region1: #{tpu_custom_call.1} parent=0
    #allocation2 [shape = 'u8[8192]{0}', space=vmem, size = 0x2000, scoped, tag = 'input window, operand 0']
    #allocation3 [shape = 's32[2]{0}', space=sflag, size = 0x8, scoped, tag = 'scoped memory for tpu_custom_call.1']
    #allocation4 [shape = 's32[2]{0}', space=sflag, size = 0x8, scoped, tag = 'scoped memory for tpu_custom_call.1']
    #allocation5 [shape = 'u8[32768]{0}', space=vmem, size = 0x8000, scoped, tag = 'input window, operand 1, single buffered']
    #allocation6 [shape = 's32[1]{0}', space=sflag, size = 0x4, scoped, tag = 'scoped memory for tpu_custom_call.1']
    #allocation7 [shape = 'u8[8192]{0}', space=vmem, size = 0x2000, scoped, tag = 'output window, operand 0']
    %8 = vsyncpa [#allocation3], 0
    %s9 = scalar_lea.sflag [#allocation3], 1
    %10 = vsyncpa %s9, 0
    %11 = vsyncpa [#allocation6], 0
    %12 = vsyncpa [#allocation4], 0
    %s13 = scalar_lea.sflag [#allocation4], 1
    %14 = vsyncpa %s13, 0
    loop: start=0, step=1, limit=4
    $region2: #{tpu_custom_call.1} parent=1 // loop_pre_header
      _
    $region3: #{tpu_custom_call.1} parent=1 // loop_header
      %s16 = sphi 0, %s20
      %p17 = scmp.ge.s32.totalorder %s16, 4
      %s26 = sphi 0, %s28
      %s29 = sphi 0, %s26
      %s30 = sphi 0, %s29
      %s46 = sphi 0, %s30
      %s50 = sphi 0, %s50
      %s52 = sphi 0, %s50
      %s53 = sphi 0, %s52
      %s67 = sphi 0, %s53
      %s71 = sphi 0, %s71
      %s73 = sphi 0, %s71
      %s74 = sphi 0, %s73
      %s88 = sphi 0, %s74
      %s94 = sphi 0, %s96
      %s97 = sphi 0, %s94
      %s98 = sphi 0, %s97
      %s114 = sphi 0, %s98
    $region4: #{tpu_custom_call.1} parent=1 // loop_header_branch
      %19 = sbr.rel (%p17) target = $region8
    $region5: #{tpu_custom_call.1} parent=1 // loop_body
      %s21 = ssub.s32 %s16, 1
      %s22 = ssub.s32 %s16, 2
      %s23 = sadd.s32 %s16, 1
      %s24 = ssub.s32 %s16, %s23
      %p25 = scmp.eq.s32.totalorder %s24, 0
      %s27 = sadd.s32 %s26, 1
      %s28 = scalar_select %p25, %s26, %s27
      %p31 = pneg %p25
      %p32 = scmp.eq.s32.totalorder %s16, 1
      %p33 = por %p31, %p32
      %p34 = scmp.ne.s32.totalorder %s26, %s29
      %p35 = scmp.eq.s32.totalorder %s16, 0
      %p36 = por %p34, %p35
      %p37 = scmp.ne.s32.totalorder %s26, %s29
      %p38 = scmp.eq.s32.totalorder %s21, 1
      %p39 = por %p37, %p38
      %p40 = scmp.ne.s32.totalorder %s29, %s30
      %p41 = scmp.eq.s32.totalorder %s21, 0
      %p42 = por %p40, %p41
      %p43 = scmp.ne.s32.totalorder %s29, %s30
      %p44 = scmp.eq.s32.totalorder %s22, 1
      %p45 = por %p43, %p44
      %p47 = scmp.ne.s32.totalorder %s30, %s46
      %p48 = scmp.eq.s32.totalorder %s22, 0
      %p49 = por %p47, %p48
      %s51 = sadd.s32 %s50, 1
      %p54 = scmp.eq.s32.totalorder %s16, 1
      %p55 = scmp.ne.s32.totalorder %s50, %s52
      %p56 = scmp.eq.s32.totalorder %s16, 0
      %p57 = por %p55, %p56
      %p58 = scmp.ne.s32.totalorder %s50, %s52
      %p59 = scmp.eq.s32.totalorder %s21, 1
      %p60 = por %p58, %p59
      %p61 = scmp.ne.s32.totalorder %s52, %s53
      %p62 = scmp.eq.s32.totalorder %s21, 0
      %p63 = por %p61, %p62
      %p64 = scmp.ne.s32.totalorder %s52, %s53
      %p65 = scmp.eq.s32.totalorder %s22, 1
      %p66 = por %p64, %p65
      %p68 = scmp.ne.s32.totalorder %s53, %s67
      %p69 = scmp.eq.s32.totalorder %s22, 0
      %p70 = por %p68, %p69
      %s72 = sadd.s32 %s71, 1
      %p75 = scmp.eq.s32.totalorder %s16, 1
      %p76 = scmp.ne.s32.totalorder %s71, %s73
      %p77 = scmp.eq.s32.totalorder %s16, 0
      %p78 = por %p76, %p77
      %p79 = scmp.ne.s32.totalorder %s71, %s73
      %p80 = scmp.eq.s32.totalorder %s21, 1
      %p81 = por %p79, %p80
      %p82 = scmp.ne.s32.totalorder %s73, %s74
      %p83 = scmp.eq.s32.totalorder %s21, 0
      %p84 = por %p82, %p83
      %p85 = scmp.ne.s32.totalorder %s73, %s74
      %p86 = scmp.eq.s32.totalorder %s22, 1
      %p87 = por %p85, %p86
      %p89 = scmp.ne.s32.totalorder %s74, %s88
      %p90 = scmp.eq.s32.totalorder %s22, 0
      %p91 = por %p89, %p90
      %s92 = ssub.s32 %s16, %s23
      %p93 = scmp.eq.s32.totalorder %s92, 0
      %s95 = sadd.s32 %s94, 1
      %s96 = scalar_select %p93, %s94, %s95
      %p99 = pneg %p93
      %p100 = scmp.eq.s32.totalorder %s16, 1
      %p101 = por %p99, %p100
      %p102 = scmp.ne.s32.totalorder %s94, %s97
      %p103 = scmp.eq.s32.totalorder %s16, 0
      %p104 = por %p102, %p103
      %p105 = scmp.ne.s32.totalorder %s94, %s97
      %p106 = scmp.eq.s32.totalorder %s21, 1
      %p107 = por %p105, %p106
      %p108 = scmp.ne.s32.totalorder %s97, %s98
      %p109 = scmp.eq.s32.totalorder %s21, 0
      %p110 = por %p108, %p109
      %p111 = scmp.ne.s32.totalorder %s97, %s98
      %p112 = scmp.eq.s32.totalorder %s22, 1
      %p113 = por %p111, %p112
      %p115 = scmp.ne.s32.totalorder %s98, %s114
      %p116 = scmp.eq.s32.totalorder %s22, 0
      %p117 = por %p115, %p116
      %p118 = scmp.le.s32.totalorder 1, %s16
      %p119 = scmp.lt.s32.totalorder %s16, 3
      %p120 = pnand %p118, %p119
      %p121 = pneg %p120
      // Predicated region
      $region9: #{tpu_custom_call.1} parent=5 // pred_check
        _
      $region10: #{tpu_custom_call.1} parent=5 // pred_check_branch
        %123 = sbr.rel (%p120) target = $region12
      $region11: #{tpu_custom_call.1} parent=5 // pred_region
        %s124 = ssub.s32 %s16, 1
        // Predicated region
        $region13: #{tpu_custom_call.1} parent=11 // pred_check
          %p125 = pneg %p63
        $region14: #{tpu_custom_call.1} parent=11 // pred_check_branch
          %127 = sbr.rel (%p125) target = $region16
        $region15: #{tpu_custom_call.1} parent=11 // pred_region
          %s129 = ssub.s32 1024, 1024
          %130 = vsyncadd [#allocation6], %s129
          %s131 = sshll.u32 [#allocation5], 4
          %s132 = int_to_ptr.vmem [resolvable:$true] %s131
          %137 = dma.hbm_to_vmem [thread:$0]  %s1, 1024, %s132, [#allocation6], 64, 64, 4
        $region16: #{tpu_custom_call.1} parent=11 // pred_fallthru
          _
        // Predicated region
        $region17: #{tpu_custom_call.1} parent=11 // pred_check
          %p138 = pneg %p84
        $region18: #{tpu_custom_call.1} parent=11 // pred_check_branch
          %140 = sbr.rel (%p138) target = $region20
        $region19: #{tpu_custom_call.1} parent=11 // pred_region
          _
        $region20: #{tpu_custom_call.1} parent=11 // pred_fallthru
          _
      $region12: #{tpu_custom_call.1} parent=5 // pred_fallthru
        _
      %p141 = scmp.lt.s32.totalorder %s16, 2
      // Predicated region
      $region21: #{tpu_custom_call.1} parent=5 // pred_check
        %p142 = pneg %p141
      $region22: #{tpu_custom_call.1} parent=5 // pred_check_branch
        %144 = sbr.rel (%p142) target = $region24
      $region23: #{tpu_custom_call.1} parent=5 // pred_region
        // Predicated region
        $region25: #{tpu_custom_call.1} parent=23 // pred_check
          %p145 = pneg %p36
        $region26: #{tpu_custom_call.1} parent=23 // pred_check_branch
          %147 = sbr.rel (%p145) target = $region28
        $region27: #{tpu_custom_call.1} parent=23 // pred_region
          %s148 = sand.u32 %s26, 1
          %s149 = scalar_lea.sflag [#allocation3], %s148
          %s150 = sand.u32 %s26, 1
          %s151 = smul.addr %s150, 8
          %s152 = scalar_lea.vmem [#allocation2], %s151
          %s154 = ssub.s32 128, 128
          %155 = vsyncadd %s149, %s154
          %s156 = smul.addr %s16, 128
          %s157 = scalar_lea.hbm %s0, %s156
          %s159 = sshll.u32 %s152, 4
          %s160 = int_to_ptr.vmem [resolvable:$true] %s159
          %162 = dma.hbm_to_vmem [thread:$0]  %s157, 128, %s160, %s149
        $region28: #{tpu_custom_call.1} parent=23 // pred_fallthru
          _
      $region24: #{tpu_custom_call.1} parent=5 // pred_fallthru
        _
      %p163 = scmp.le.s32.totalorder 1, %s16
      %p164 = scmp.lt.s32.totalorder %s16, 3
      %p165 = pnand %p163, %p164
      %p166 = pneg %p165
      // Predicated region
      $region29: #{tpu_custom_call.1} parent=5 // pred_check
        _
      $region30: #{tpu_custom_call.1} parent=5 // pred_check_branch
        %168 = sbr.rel (%p165) target = $region32
      $region31: #{tpu_custom_call.1} parent=5 // pred_region
        %s169 = ssub.s32 %s16, 1
        %s170 = sand.u32 %s29, 1
        %s171 = scalar_lea.sflag [#allocation3], %s170
        %s172 = sand.u32 %s29, 1
        %s173 = smul.addr %s172, 8
        %s174 = scalar_lea.vmem [#allocation2], %s173
        // Predicated region
        $region33: #{tpu_custom_call.1} parent=31 // pred_check
          %p175 = pneg %p42
        $region34: #{tpu_custom_call.1} parent=31 // pred_check_branch
          %177 = sbr.rel (%p175) target = $region36
        $region35: #{tpu_custom_call.1} parent=31 // pred_region
          %178 = dma.done %s171, 128
        $region36: #{tpu_custom_call.1} parent=31 // pred_fallthru
          _
        // Predicated region
        $region37: #{tpu_custom_call.1} parent=31 // pred_check
          %p179 = pneg %p63
        $region38: #{tpu_custom_call.1} parent=31 // pred_check_branch
          %181 = sbr.rel (%p179) target = $region40
        $region39: #{tpu_custom_call.1} parent=31 // pred_region
          %182 = dma.done [#allocation6], 1024
        $region40: #{tpu_custom_call.1} parent=31 // pred_fallthru
          _
        %s183 = sand.u32 %s29, 1
        %s184 = scalar_lea.sflag [#allocation3], %s183
        %s185 = sand.u32 %s29, 1
        %s186 = smul.addr %s185, 8
        %s187 = scalar_lea.vmem [#allocation2], %s186
        %p188 = pneg %p42
        %p189 = pneg %p39
        %p190 = pneg %p63
        %p191 = pneg %p60
        %p192 = pneg %p84
        %p193 = pneg %p81
        %p194 = pneg %p110
        %p195 = pneg %p107
        %s196 = sand.u32 %s97, 1
        %s197 = scalar_lea.sflag [#allocation4], %s196
        %s198 = sand.u32 %s97, 1
        %s199 = smul.addr %s198, 8
        %s200 = scalar_lea.vmem [#allocation7], %s199
        %v202 = vld [vmem:[%s174] sm:$0xff]
        %v203 = vpack.c.bf16 %v202, %v202
        %v204 = vld [vmem:[#allocation5] sm:$0xf]
        %v205 = vld [vmem:[#allocation5 + $0x4] sm:$0xf]
        %v206 = vld [vmem:[#allocation5 + $0x8] sm:$0xf]
        %v207 = vld [vmem:[#allocation5 + $0xc] sm:$0xf]
        %v208 = vld [vmem:[#allocation5 + $0x10] sm:$0xf]
        %v209 = vld [vmem:[#allocation5 + $0x14] sm:$0xf]
        %v210 = vld [vmem:[#allocation5 + $0x18] sm:$0xf]
        %v211 = vld [vmem:[#allocation5 + $0x1c] sm:$0xf]
        %v212 = vld [vmem:[#allocation5 + $0x20] sm:$0xf]
        %v213 = vld [vmem:[#allocation5 + $0x24] sm:$0xf]
        %v214 = vld [vmem:[#allocation5 + $0x28] sm:$0xf]
        %v215 = vld [vmem:[#allocation5 + $0x2c] sm:$0xf]
        %v216 = vld [vmem:[#allocation5 + $0x30] sm:$0xf]
        %v217 = vld [vmem:[#allocation5 + $0x34] sm:$0xf]
        %v218 = vld [vmem:[#allocation5 + $0x38] sm:$0xf]
        %v219 = vld [vmem:[#allocation5 + $0x3c] sm:$0xf]
        %v236 = vunpack.c.l.b16 %v204
        %v237 = vunpack.c.l.b16 %v205
        %v238 = vunpack.c.l.b16 %v206
        %v239 = vunpack.c.l.b16 %v207
        %v240 = vunpack.c.l.b16 %v208
        %v241 = vunpack.c.l.b16 %v209
        %v242 = vunpack.c.l.b16 %v210
        %v243 = vunpack.c.l.b16 %v211
        %v244 = vunpack.c.l.b16 %v212
        %v245 = vunpack.c.l.b16 %v213
        %v246 = vunpack.c.l.b16 %v214
        %v247 = vunpack.c.l.b16 %v215
        %v248 = vunpack.c.l.b16 %v216
        %v249 = vunpack.c.l.b16 %v217
        %v250 = vunpack.c.l.b16 %v218
        %v251 = vunpack.c.l.b16 %v219
        %v252 = vpack.c.b16 %v237, %v236
        %v253 = vpack.c.b16 %v239, %v238
        %v254 = vpack.c.b16 %v241, %v240
        %v255 = vpack.c.b16 %v243, %v242
        %v256 = vpack.c.b16 %v245, %v244
        %v257 = vpack.c.b16 %v247, %v246
        %v258 = vpack.c.b16 %v249, %v248
        %v259 = vpack.c.b16 %v251, %v250
        %268 = vmatprep.subr.bf16.mxu0 0
        %269 = vmatpush1.bf16.msra.mxu0 %v252
        %270 = vmatprep.subr.bf16.mxu0 0
        %271 = vmatpush1.bf16.msra.mxu0 %v253
        %272 = vmatprep.subr.bf16.mxu0 0
        %273 = vmatpush1.bf16.msra.mxu0 %v254
        %274 = vmatprep.subr.bf16.mxu0 0
        %275 = vmatpush1.bf16.msra.mxu0 %v255
        %276 = vmatprep.subr.bf16.mxu0 0
        %277 = vmatpush1.bf16.msra.mxu0 %v256
        %278 = vmatprep.subr.bf16.mxu0 0
        %279 = vmatpush1.bf16.msra.mxu0 %v257
        %280 = vmatprep.subr.bf16.mxu0 0
        %281 = vmatpush1.bf16.msra.mxu0 %v258
        %282 = vmatprep.subr.bf16.mxu0 0
        %283 = vmatpush1.bf16.msra.mxu0 %v259
        %284 = vmatprep.subr.bf16.mxu0 0
        %285 = vmatpush1.bf16.msra.mxu0 0
        %286 = vmatprep.subr.bf16.mxu0 0
        %287 = vmatpush1.bf16.msra.mxu0 0
        %288 = vmatprep.subr.bf16.mxu0 0
        %289 = vmatpush1.bf16.msra.mxu0 0
        %290 = vmatprep.subr.bf16.mxu0 0
        %291 = vmatpush1.bf16.msra.mxu0 0
        %292 = vmatprep.subr.bf16.mxu0 0
        %293 = vmatpush1.bf16.msra.mxu0 0
        %294 = vmatprep.subr.bf16.mxu0 0
        %295 = vmatpush1.bf16.msra.mxu0 0
        %296 = vmatprep.subr.bf16.mxu0 0
        %297 = vmatpush1.bf16.msra.mxu0 0
        %298 = vmatprep.subr.bf16.mxu0 0
        %299 = vmatpush1.bf16.msra.mxu0 0
        %300 = vmatprep.mubr.bf16.mxu0 0
        %301 = vmatmul.mubr.bf16.gmra.mrb[0].mxu0 %v203
        %v302 = vpop.f32.mrb[0].mxu0
        %v303 = vadd.f32 0.0, %v302
        %v304 = vpop.f32.mrb[0].mxu0
        %v305 = vpop.f32.mrb[0].mxu0
        %v306 = vpop.f32.mrb[0].mxu0
        %307 = vdwg.mxu0
        %v308 = vadd.f32 %v202, %v303
        %v309 = vld [vmem:[%s2] sm:$0x1]
        %v311 = vlaneseq
        %v312 = vshrl.u32 %v311, 7
        %v313 = vsub.s32 0, %v312
        %v314 = vrot.slane %v309, %v313
        %v316 = vadd.f32 %v308, %v314
        %317 = vst [vmem:[%s200] sm:$0xff] %v316
        %s318 = sand.u32 %s97, 1
        %s319 = scalar_lea.sflag [#allocation4], %s318
        %s320 = sand.u32 %s97, 1
        %s321 = smul.addr %s320, 8
        %s322 = scalar_lea.vmem [#allocation7], %s321
        // Predicated region
        $region41: #{tpu_custom_call.1} parent=31 // pred_check
          %p323 = pneg %p107
        $region42: #{tpu_custom_call.1} parent=31 // pred_check_branch
          %325 = sbr.rel (%p323) target = $region44
        $region43: #{tpu_custom_call.1} parent=31 // pred_region
          %s327 = ssub.s32 128, 128
          %328 = vsyncadd %s319, %s327
          %s329 = smul.addr %s21, 128
          %s330 = scalar_lea.hbm %s3, %s329
          %s332 = sshll.u32 %s322, 4
          %s333 = int_to_ptr.vmem [resolvable:$true] %s332
          %335 = dma.vmem_to_hbm [thread:$0]  %s333, 128, %s330, %s319
        $region44: #{tpu_custom_call.1} parent=31 // pred_fallthru
          _
      $region32: #{tpu_custom_call.1} parent=5 // pred_fallthru
        _
      %p336 = scmp.le.s32.totalorder 2, %s16
      // Predicated region
      $region45: #{tpu_custom_call.1} parent=5 // pred_check
        %p337 = pneg %p336
      $region46: #{tpu_custom_call.1} parent=5 // pred_check_branch
        %339 = sbr.rel (%p337) target = $region48
      $region47: #{tpu_custom_call.1} parent=5 // pred_region
        %s340 = ssub.s32 %s16, 2
        // Predicated region
        $region49: #{tpu_custom_call.1} parent=47 // pred_check
          %p341 = pneg %p113
        $region50: #{tpu_custom_call.1} parent=47 // pred_check_branch
          %343 = sbr.rel (%p341) target = $region52
        $region51: #{tpu_custom_call.1} parent=47 // pred_region
          %s344 = sand.u32 %s98, 1
          %s345 = scalar_lea.sflag [#allocation4], %s344
          %s346 = sand.u32 %s98, 1
          %s347 = smul.addr %s346, 8
          %s348 = scalar_lea.vmem [#allocation7], %s347
          %349 = dma.done %s345, 128
        $region52: #{tpu_custom_call.1} parent=47 // pred_fallthru
          _
      $region48: #{tpu_custom_call.1} parent=5 // pred_fallthru
        _
    $region6: #{tpu_custom_call.1} parent=1 // loop_footer
      %s20 = sadd.s32 1, %s16
    $region7: #{tpu_custom_call.1} parent=1 // loop_footer_branch
      %15 = sbr.rel target = $region3
    $region8: #{tpu_custom_call.1} parent=1 // loop_exit
      _
    %350 = vsyncpa [#allocation3], 1
    %s351 = scalar_lea.sflag [#allocation3], 1
    %352 = vsyncpa %s351, 1
    %353 = vsyncpa [#allocation6], 1
    %354 = vsyncpa [#allocation4], 1
    %s355 = scalar_lea.sflag [#allocation4], 1
    %356 = vsyncpa %s355, 1

</llo_original>
